<compile_context>
chip_gen: v7x
topology: tpu7x:2x2x1
jax: 0.10.0
libtpu: 0.0.40
codegen_flags: <defaults>
</compile_context>

<pallas_src>
import jax
import jax.numpy as jnp
from jax.experimental import pallas as pl
from jax.experimental.pallas import tpu as pltpu


def _cdiv(a, b):
    return -(-a // b)


def _round_up(x, m):
    return _cdiv(x, m) * m


def _pad2d(a, rows, cols):
    pr, pc = rows - a.shape[0], cols - a.shape[1]
    if pr or pc:
        a = jnp.pad(a, ((0, pr), (0, pc)))
    return a


def _vmem_budget_bytes():
    """Generation-aware scoped-VMEM budget: ~70% of per-core VMEM, capped at 96 MiB.
    (128 MiB on v5e/v6e -> ~90 MiB; 64 MiB per TC on v7x -> ~45 MiB.)"""
    cap = 64 << 20  # conservative fallback (v7x per-TC VMEM)
    try:
        info = pltpu.get_tpu_info()
        cap = int(getattr(info, "vmem_capacity_bytes", cap))
    except Exception:
        pass
    return int(min(cap * 0.7, 96 << 20))


def _pick_tile(dim, max_lanes, min_blocks=1):
    """Lane-dense tile (multiple of 128) of at most max_lanes*128, balanced so the
    padded extent splits into >= min_blocks blocks when the dim allows it."""
    lanes = _cdiv(dim, 128)
    nb = _cdiv(lanes, max_lanes)
    if lanes >= min_blocks:
        nb = max(nb, min_blocks)
    return _cdiv(lanes, nb) * 128


def _fc_gated_kernel(x_ref, w_ref, b_ref, g_ref, out_ref):
    """out = gate * (x @ w + b).  K (grid axis 2, innermost) accumulates directly
    into the resident f32 output block."""
    k = pl.program_id(2)

    @pl.when(k == 0)
    def _():
        # Seed the accumulator with the broadcast bias (removes a finalize pass).
        out_ref[...] = jnp.broadcast_to(b_ref[...], out_ref.shape)

    # Standard lhs(tm,tk) @ rhs(tk,tn) -> no transposed-RHS contraction.
    out_ref[...] += jnp.dot(x_ref[...], w_ref[...],
                            preferred_element_type=jnp.float32)

    @pl.when(k == pl.num_programs(2) - 1)
    def _():
        out_ref[...] *= g_ref[...]


def make_spiking_fc_layer_fixed_gates(weight, bias, gate_mask, *,
                                      compute_dtype=jnp.bfloat16,
                                      tn=None, tk=None, tm_max=512):
    """Build the layer once (pad / transpose / cast parameters, choose N/K tiles)
    and return a jitted forward(x, gate_input) -> [B, out_size] (f32)."""
    out_size, in_size = weight.shape
    comp_bytes = jnp.dtype(compute_dtype).itemsize
    budget = _vmem_budget_bytes()

    def working_set(tm_, tn_, tk_):
        return (2 * tm_ * tk_ * comp_bytes      # x stream (double-buffered)
                + 2 * tk_ * tn_ * comp_bytes    # weight stream
                + 2 * tm_ * tn_ * 4             # precomputed gate stream (f32)
                + 2 * tn_ * 4                   # bias
                + 2 * tm_ * tn_ * 4)            # output blocks (f32)

    if tn is None or tk is None:
        n_max, k_max = 4, 16                    # <=512 N tile, <=2048 K tile
        while True:
            tn_c = _pick_tile(out_size, n_max, min_blocks=2)  # >=2 N blocks (megacore)
            tk_c = _pick_tile(in_size, k_max, min_blocks=1)
            if working_set(tm_max, tn_c, tk_c) <= budget or (k_max <= 2 and n_max <= 1):
                break
            if k_max > 2:
                k_max //= 2
            else:
                n_max //= 2
        tn = tn if tn is not None else tn_c
        tk = tk if tk is not None else tk_c

    Np = _round_up(out_size, tn)
    Kp = _round_up(in_size, tk)

    # Parameters are constants across calls: pad / transpose / cast ONCE and cache.
    w_t = _pad2d(jnp.asarray(weight).T, Kp, Np).astype(compute_dtype)   # [in, out]
    b_p = _pad2d(jnp.asarray(bias, jnp.float32).reshape(1, -1), 1, Np)  # [1, out]
    gm_f32 = jnp.asarray(gate_mask, jnp.float32)

    @jax.jit
    def forward(x, gate_input):
        B = x.shape[0]
        if B <= tm_max:
            tm = _round_up(B, 8)
        else:  # pick the large tile minimizing batch padding
            tm = min((512, 256, 128), key=lambda c: (_round_up(B, c) - B, -c))
        Bp = _round_up(B, tm)

        xp = _pad2d(x, Bp, Kp).astype(compute_dtype)
        # Gate matmul has tiny contraction depth (gate_size) -> plain XLA, then
        # streamed into the kernel as a lane-dense f32 (tm, tn) block.
        gate = jnp.dot(jnp.asarray(gate_input, jnp.float32), gm_f32,
                       preferred_element_type=jnp.float32)
        gp = _pad2d(gate, Bp, Np)

        grid = (Bp // tm, Np // tn, Kp // tk)
        flops = 2 * B * out_size * in_size
        bytes_accessed = (Bp * Kp * comp_bytes + Kp * Np * comp_bytes
                          + 4 * (Np + Bp * Np + Bp * Np))

        out_padded = pl.pallas_call(
            _fc_gated_kernel,
            out_shape=jax.ShapeDtypeStruct((Bp, Np), jnp.float32),
            grid_spec=pltpu.PrefetchScalarGridSpec(
                num_scalar_prefetch=0,
                grid=grid,
                in_specs=[
                    pl.BlockSpec((tm, tk), lambda i, j, k: (i, k)),   # x (bf16)
                    pl.BlockSpec((tk, tn), lambda i, j, k: (k, j)),   # W^T [in,out] (bf16)
                    pl.BlockSpec((1, tn), lambda i, j, k: (0, j)),    # bias (f32)
                    pl.BlockSpec((tm, tn), lambda i, j, k: (i, j)),   # gate (f32)
                ],
                out_specs=pl.BlockSpec((tm, tn), lambda i, j, k: (i, j)),
            ),
            compiler_params=pltpu.CompilerParams(
                dimension_semantics=("parallel", "parallel", "arbitrary"),
                vmem_limit_bytes=budget,
            ),
            cost_estimate=pl.CostEstimate(
                flops=flops, transcendentals=0, bytes_accessed=bytes_accessed),
        )(xp, w_t, b_p, gp)

        return out_padded[:B, :out_size]

    return forward


if __name__ == "__main__":
    # Small, module-consistent shapes.
    B, in_size, out_size, gate_size = 8, 32, 64, 16
    gating_prop = 0.8

    key = jax.random.PRNGKey(0)
    kx, kw, kb, kg, km = jax.random.split(key, 5)

    x = jax.random.normal(kx, (B, in_size), dtype=jnp.float32)
    gate_input = jax.random.normal(kg, (B, gate_size), dtype=jnp.float32)

    # Deterministic parameter init (Kaiming-uniform-ish bound like nn.Linear).
    bound = 1.0 / jnp.sqrt(in_size)
    weight = jax.random.uniform(kw, (out_size, in_size), dtype=jnp.float32,
                                minval=-bound, maxval=bound)
    bias = jax.random.uniform(kb, (out_size,), dtype=jnp.float32,
                              minval=-bound, maxval=bound)
    # Fixed gate mask: 1.0 with prob (1 - gating_prop), else 0.0.
    gate_mask = jax.random.bernoulli(
        km, p=1.0 - gating_prop, shape=(gate_size, out_size)).astype(jnp.float32)

    forward = make_spiking_fc_layer_fixed_gates(weight, bias, gate_mask)
    out = forward(x, gate_input)
    jax.block_until_ready(out)

    # Reference in plain f32 JAX. The kernel runs the matmul with bf16 operands
    # (f32 accumulation), so compare with a correspondingly loosened tolerance.
    ref = (gate_input @ gate_mask) * (x @ weight.T + bias)
    assert out.shape == (B, out_size)
    assert jnp.allclose(out, ref, atol=5e-2, rtol=5e-2), \
        float(jnp.max(jnp.abs(out - ref)))

    print("KERNEL_OK")
</pallas_src>

<mosaic_0001>
module attributes {stable_mosaic.version = 11 : i64} {
  func.func @_fc_gated_kernel(%arg0: i32, %arg1: i32, %arg2: i32, %arg3: memref<8x128xbf16, #tpu.memory_space<vmem>>, %arg4: memref<128x128xbf16, #tpu.memory_space<vmem>>, %arg5: memref<1x128xf32, #tpu.memory_space<vmem>>, %arg6: memref<8x128xf32, #tpu.memory_space<vmem>>, %arg7: memref<8x128xf32, #tpu.memory_space<vmem>>) attributes {dimension_semantics = [#tpu.dimension_semantics<parallel>, #tpu.dimension_semantics<parallel>, #tpu.dimension_semantics<arbitrary>], iteration_bounds = array<i64: 1, 1, 1>, scalar_prefetch = 0 : i64, scratch_operands = 0 : i64, tpu.core_type = #tpu.core_type<tc>, window_params = [{transform_indices = @transform_0, window_bounds = array<i64: 8, 128>}, {transform_indices = @transform_1, window_bounds = array<i64: 128, 128>}, {transform_indices = @transform_2, window_bounds = array<i64: 1, 128>}, {transform_indices = @transform_3, window_bounds = array<i64: 8, 128>}, {transform_indices = @transform_4, window_bounds = array<i64: 8, 128>}]} {
    %c0_i32 = arith.constant 0 : i32
    %0 = arith.cmpi eq, %arg2, %c0_i32 : i32
    %1 = arith.extui %0 : i1 to i32
    %c0_i32_0 = arith.constant 0 : i32
    %2 = arith.cmpi ne, %1, %c0_i32_0 : i32
    scf.if %2 {
      %c0_10 = arith.constant 0 : index
      %c0_11 = arith.constant 0 : index
      %12 = vector.load %arg5[%c0_10, %c0_11] : memref<1x128xf32, #tpu.memory_space<vmem>>, vector<1x128xf32>
      %13 = vector.shape_cast %12 : vector<1x128xf32> to vector<1x128xf32>
      %14 = vector.broadcast %13 : vector<1x128xf32> to vector<8x128xf32>
      %c0_12 = arith.constant 0 : index
      %c0_13 = arith.constant 0 : index
      %15 = vector.load %arg7[%c0_12, %c0_13] : memref<8x128xf32, #tpu.memory_space<vmem>>, vector<8x128xf32>
      tpu.vector_store %arg7[%c0_12, %c0_13], %14 {strides = array<i32>} : memref<8x128xf32, #tpu.memory_space<vmem>>, vector<8x128xf32>,
    } else {
    }
    %c0 = arith.constant 0 : index
    %c0_1 = arith.constant 0 : index
    %3 = vector.load %arg7[%c0, %c0_1] : memref<8x128xf32, #tpu.memory_space<vmem>>, vector<8x128xf32>
    %c0_2 = arith.constant 0 : index
    %c0_3 = arith.constant 0 : index
    %4 = vector.load %arg3[%c0_2, %c0_3] : memref<8x128xbf16, #tpu.memory_space<vmem>>, vector<8x128xbf16>
    %c0_4 = arith.constant 0 : index
    %c0_5 = arith.constant 0 : index
    %5 = vector.load %arg4[%c0_4, %c0_5] : memref<128x128xbf16, #tpu.memory_space<vmem>>, vector<128x128xbf16>
    %cst = arith.constant dense<0.000000e+00> : vector<8x128xf32>
    %6 = tpu.matmul %4, %5, %cst {dimension_numbers = #tpu.dot_dimension_numbers<[1], [0], [0], [1], [0, 0, 1, 1], [], []>} : vector<8x128xbf16>, vector<128x128xbf16>, vector<8x128xf32> -> vector<8x128xf32>
    %7 = arith.addf %3, %6 : vector<8x128xf32>
    %c0_6 = arith.constant 0 : index
    %c0_7 = arith.constant 0 : index
    %8 = vector.load %arg7[%c0_6, %c0_7] : memref<8x128xf32, #tpu.memory_space<vmem>>, vector<8x128xf32>
    tpu.vector_store %arg7[%c0_6, %c0_7], %7 {strides = array<i32>} : memref<8x128xf32, #tpu.memory_space<vmem>>, vector<8x128xf32>,
    %c0_i32_8 = arith.constant 0 : i32
    %9 = arith.cmpi eq, %arg2, %c0_i32_8 : i32
    %10 = arith.extui %9 : i1 to i32
    %c0_i32_9 = arith.constant 0 : i32
    %11 = arith.cmpi ne, %10, %c0_i32_9 : i32
    scf.if %11 {
      %c0_10 = arith.constant 0 : index
      %c0_11 = arith.constant 0 : index
      %12 = vector.load %arg7[%c0_10, %c0_11] : memref<8x128xf32, #tpu.memory_space<vmem>>, vector<8x128xf32>
      %c0_12 = arith.constant 0 : index
      %c0_13 = arith.constant 0 : index
      %13 = vector.load %arg6[%c0_12, %c0_13] : memref<8x128xf32, #tpu.memory_space<vmem>>, vector<8x128xf32>
      %14 = arith.mulf %12, %13 : vector<8x128xf32>
      %c0_14 = arith.constant 0 : index
      %c0_15 = arith.constant 0 : index
      %15 = vector.load %arg7[%c0_14, %c0_15] : memref<8x128xf32, #tpu.memory_space<vmem>>, vector<8x128xf32>
      tpu.vector_store %arg7[%c0_14, %c0_15], %14 {strides = array<i32>} : memref<8x128xf32, #tpu.memory_space<vmem>>, vector<8x128xf32>,
    } else {
    }
    return
  }
  func.func @transform_0(%arg0: i32, %arg1: i32, %arg2: i32) -> (i32, i32) {
    %c0_i32 = arith.constant 0 : i32
    return %arg0, %arg2 : i32, i32
  }
  func.func @transform_1(%arg0: i32, %arg1: i32, %arg2: i32) -> (i32, i32) {
    %c0_i32 = arith.constant 0 : i32
    return %arg2, %arg1 : i32, i32
  }
  func.func @transform_2(%arg0: i32, %arg1: i32, %arg2: i32) -> (i32, i32) {
    %c0_i32 = arith.constant 0 : i32
    %c0_i32_0 = arith.constant 0 : i32
    return %c0_i32, %arg1 : i32, i32
  }
  func.func @transform_3(%arg0: i32, %arg1: i32, %arg2: i32) -> (i32, i32) {
    %c0_i32 = arith.constant 0 : i32
    return %arg0, %arg1 : i32, i32
  }
  func.func @transform_4(%arg0: i32, %arg1: i32, %arg2: i32) -> (i32, i32) {
    %c0_i32 = arith.constant 0 : i32
    return %arg0, %arg1 : i32, i32
  }
}

</mosaic_0001>

<llo_original>
// kernel: forward.1
$region0: #{forward.1}
  #allocation0 [shape = 'u32[]', space=smem, size = 0x4, offset = 0x4, fixed_abs, tag = 'smem constant byte address 0x4 - core index']
  #allocation1 [shape = 'u32[144,128]{1,0:T(1,128)}', space=vmem, size = 0x12000, scoped, tag = 'internal scratch']
  %s0 = inlined_call_operand.vmem [shape: bf16[8,128], index: 0, kind: input, shape index: {}]
  %s1 = inlined_call_operand.vmem [shape: bf16[128,128], index: 1, kind: input, shape index: {}]
  %s2 = inlined_call_operand.vmem [shape: f32[1,128], index: 2, kind: input, shape index: {}]
  %s3 = inlined_call_operand.vmem [shape: f32[8,128], index: 3, kind: input, shape index: {}]
  %s4 = inlined_call_operand.hbm [shape: f32[8,128], index: 4, kind: output, shape index: {}]
  %s5 = sld [smem:[#allocation0]]
  $region34: #{forward.1} parent=0
    _
  %s7 = ssub.s32 1, %s5
  %s8 = scalar_select 0, %s7, %s5
  $region1: #{forward.1} parent=0
    #allocation2 [shape = 'u8[4096]{0}', space=vmem, size = 0x1000, scoped, tag = 'output window, operand 0, single buffered']
    #allocation3 [shape = 's32[1]{0}', space=sflag, size = 0x4, scoped, tag = 'scoped memory for forward.1']
    %9 = vsyncpa [#allocation3], 0
    // Predicated region
    $region2: #{forward.1} parent=1 // pred_check
      _
    $region3: #{forward.1} parent=1 // pred_check_branch
      %11 = sbr.rel (0) target = $region5
    $region4: #{forward.1} parent=1 // pred_region
      _
    $region5: #{forward.1} parent=1 // pred_fallthru
      _
    // Predicated region
    $region6: #{forward.1} parent=1 // pred_check
      _
    $region7: #{forward.1} parent=1 // pred_check_branch
      %13 = sbr.rel (0) target = $region9
    $region8: #{forward.1} parent=1 // pred_region
      _
    $region9: #{forward.1} parent=1 // pred_fallthru
      _
    // Predicated region
    $region10: #{forward.1} parent=1 // pred_check
      _
    $region11: #{forward.1} parent=1 // pred_check_branch
      %15 = sbr.rel (0) target = $region13
    $region12: #{forward.1} parent=1 // pred_region
      _
    $region13: #{forward.1} parent=1 // pred_fallthru
      _
    // Predicated region
    $region14: #{forward.1} parent=1 // pred_check
      _
    $region15: #{forward.1} parent=1 // pred_check_branch
      %17 = sbr.rel (0) target = $region17
    $region16: #{forward.1} parent=1 // pred_region
      _
    $region17: #{forward.1} parent=1 // pred_fallthru
      _
    %p19 = scmp.eq.s32.totalorder 0, 0
    // Predicated region
    $region18: #{forward.1} parent=1 // pred_check
      %p20 = pneg %p19
    $region19: #{forward.1} parent=1 // pred_check_branch
      %22 = sbr.rel (%p20) target = $region21
    $region20: #{forward.1} parent=1 // pred_region
      %v23 = vld [vmem:[%s2] sm:$0x1]
      %v25 = vlaneseq
      %v26 = vshrl.u32 %v25, 7
      %v27 = vsub.s32 0, %v26
      %v28 = vrot.slane %v23, %v27
      %30 = vst [vmem:[#allocation2] sm:$0xff] %v28
    $region21: #{forward.1} parent=1 // pred_fallthru
      _
    %v31 = vld [vmem:[#allocation2] sm:$0xff]
    %v32 = vld [vmem:[%s0] sm:$0xf]
    %v33 = vld [vmem:[%s1] sm:$0xf]
    %v34 = vld [vmem:[%s1 + $0x4] sm:$0xf]
    %v35 = vld [vmem:[%s1 + $0x8] sm:$0xf]
    %v36 = vld [vmem:[%s1 + $0xc] sm:$0xf]
    %v37 = vld [vmem:[%s1 + $0x10] sm:$0xf]
    %v38 = vld [vmem:[%s1 + $0x14] sm:$0xf]
    %v39 = vld [vmem:[%s1 + $0x18] sm:$0xf]
    %v40 = vld [vmem:[%s1 + $0x1c] sm:$0xf]
    %v41 = vld [vmem:[%s1 + $0x20] sm:$0xf]
    %v42 = vld [vmem:[%s1 + $0x24] sm:$0xf]
    %v43 = vld [vmem:[%s1 + $0x28] sm:$0xf]
    %v44 = vld [vmem:[%s1 + $0x2c] sm:$0xf]
    %v45 = vld [vmem:[%s1 + $0x30] sm:$0xf]
    %v46 = vld [vmem:[%s1 + $0x34] sm:$0xf]
    %v47 = vld [vmem:[%s1 + $0x38] sm:$0xf]
    %v48 = vld [vmem:[%s1 + $0x3c] sm:$0xf]
    %v65 = vunpack.c.l.b16 %v33
    %v66 = vunpack.c.l.b16 %v34
    %v67 = vunpack.c.l.b16 %v35
    %v68 = vunpack.c.l.b16 %v36
    %v69 = vunpack.c.l.b16 %v37
    %v70 = vunpack.c.l.b16 %v38
    %v71 = vunpack.c.l.b16 %v39
    %v72 = vunpack.c.l.b16 %v40
    %v73 = vunpack.c.l.b16 %v41
    %v74 = vunpack.c.l.b16 %v42
    %v75 = vunpack.c.l.b16 %v43
    %v76 = vunpack.c.l.b16 %v44
    %v77 = vunpack.c.l.b16 %v45
    %v78 = vunpack.c.l.b16 %v46
    %v79 = vunpack.c.l.b16 %v47
    %v80 = vunpack.c.l.b16 %v48
    %v81 = vpack.c.b16 %v66, %v65
    %v82 = vpack.c.b16 %v68, %v67
    %v83 = vpack.c.b16 %v70, %v69
    %v84 = vpack.c.b16 %v72, %v71
    %v85 = vpack.c.b16 %v74, %v73
    %v86 = vpack.c.b16 %v76, %v75
    %v87 = vpack.c.b16 %v78, %v77
    %v88 = vpack.c.b16 %v80, %v79
    %97 = vmatprep.subr.bf16.mxu0 0
    %98 = vmatpush1.bf16.msra.mxu0 %v81
    %99 = vmatprep.subr.bf16.mxu0 0
    %100 = vmatpush1.bf16.msra.mxu0 %v82
    %101 = vmatprep.subr.bf16.mxu0 0
    %102 = vmatpush1.bf16.msra.mxu0 %v83
    %103 = vmatprep.subr.bf16.mxu0 0
    %104 = vmatpush1.bf16.msra.mxu0 %v84
    %105 = vmatprep.subr.bf16.mxu0 0
    %106 = vmatpush1.bf16.msra.mxu0 %v85
    %107 = vmatprep.subr.bf16.mxu0 0
    %108 = vmatpush1.bf16.msra.mxu0 %v86
    %109 = vmatprep.subr.bf16.mxu0 0
    %110 = vmatpush1.bf16.msra.mxu0 %v87
    %111 = vmatprep.subr.bf16.mxu0 0
    %112 = vmatpush1.bf16.msra.mxu0 %v88
    %113 = vmatprep.subr.bf16.mxu0 0
    %114 = vmatpush1.bf16.msra.mxu0 0
    %115 = vmatprep.subr.bf16.mxu0 0
    %116 = vmatpush1.bf16.msra.mxu0 0
    %117 = vmatprep.subr.bf16.mxu0 0
    %118 = vmatpush1.bf16.msra.mxu0 0
    %119 = vmatprep.subr.bf16.mxu0 0
    %120 = vmatpush1.bf16.msra.mxu0 0
    %121 = vmatprep.subr.bf16.mxu0 0
    %122 = vmatpush1.bf16.msra.mxu0 0
    %123 = vmatprep.subr.bf16.mxu0 0
    %124 = vmatpush1.bf16.msra.mxu0 0
    %125 = vmatprep.subr.bf16.mxu0 0
    %126 = vmatpush1.bf16.msra.mxu0 0
    %127 = vmatprep.subr.bf16.mxu0 0
    %128 = vmatpush1.bf16.msra.mxu0 0
    %129 = vmatprep.mubr.bf16.mxu0 0
    %130 = vmatmul.mubr.bf16.gmra.mrb[0].mxu0 %v32
    %v131 = vpop.f32.mrb[0].mxu0
    %v132 = vadd.f32 0.0, %v131
    %v133 = vpop.f32.mrb[0].mxu0
    %v134 = vpop.f32.mrb[0].mxu0
    %v135 = vpop.f32.mrb[0].mxu0
    %136 = vdwg.mxu0
    %v137 = vadd.f32 %v31, %v132
    %138 = vst [vmem:[#allocation2] sm:$0xff] %v137
    // Predicated region
    $region22: #{forward.1} parent=1 // pred_check
      %p139 = pneg %p19
    $region23: #{forward.1} parent=1 // pred_check_branch
      %141 = sbr.rel (%p139) target = $region25
    $region24: #{forward.1} parent=1 // pred_region
      %v142 = vld [vmem:[#allocation2] sm:$0xff]
      %v143 = vld [vmem:[%s3] sm:$0xff]
      %v144 = vmul.f32 %v142, %v143
      %145 = vst [vmem:[#allocation2] sm:$0xff] %v144
    $region25: #{forward.1} parent=1 // pred_fallthru
      _
    // Predicated region
    $region26: #{forward.1} parent=1 // pred_check
      _
    $region27: #{forward.1} parent=1 // pred_check_branch
      %147 = sbr.rel (0) target = $region29
    $region28: #{forward.1} parent=1 // pred_region
      %s149 = ssub.s32 128, 128
      %150 = vsyncadd [#allocation3], %s149
      %s152 = sshll.u32 [#allocation2], 4
      %s153 = int_to_ptr.vmem [resolvable:$true] %s152
      %155 = dma.vmem_to_hbm [thread:$0]  %s153, 128, %s4, [#allocation3]
    $region29: #{forward.1} parent=1 // pred_fallthru
      _
    // Predicated region
    $region30: #{forward.1} parent=1 // pred_check
      _
    $region31: #{forward.1} parent=1 // pred_check_branch
      %157 = sbr.rel (0) target = $region33
    $region32: #{forward.1} parent=1 // pred_region
      %158 = dma.done [#allocation3], 128
    $region33: #{forward.1} parent=1 // pred_fallthru
      _
    %159 = vsyncpa [#allocation3], 1

</llo_original>
